<compile_context>
chip_gen: v5e
topology: v5e:2x2
jax: 0.10.0
libtpu: 0.0.40
codegen_flags: <defaults>
</compile_context>

<pallas_src>
import functools

import jax
import jax.numpy as jnp
from jax import lax
from jax.experimental import pallas as pl
from jax.experimental.pallas import tpu as pltpu


def _round_up(v, m):
    return (v + m - 1) // m * m


def _vmem_sizes():
    """Generation-aware VMEM limit/budget (v5e/v6e: 128 MiB, v7x: 64 MiB/core)."""
    cap = 0
    try:
        info = pltpu.get_tpu_info()
        cap = int(getattr(info, "vmem_capacity_bytes", 0) or 0)
    except Exception:
        cap = 0
    if cap <= 0:
        cap = 64 * 1024 * 1024  # conservative fallback = v7x per-core VMEM
    limit = min((cap * 3) // 4, 96 * 1024 * 1024)   # 96 MiB v5e/v6e, 48 MiB v7x
    budget = min(cap // 2, 64 * 1024 * 1024)        # 64 MiB v5e/v6e, 32 MiB v7x
    return budget, limit


def _make_block_spec(shape, index_map, buffer_count=None):
    """BlockSpec, optionally requesting a deeper pipeline for small blocks."""
    if buffer_count is not None and buffer_count > 2:
        try:
            return pl.BlockSpec(shape, index_map,
                                pipeline_mode=pl.Buffered(buffer_count))
        except Exception:
            pass
    return pl.BlockSpec(shape, index_map)


# ----------------------------------------------------------------------------
# Kernels
# ----------------------------------------------------------------------------
def _bn_onepass_kernel(x_ref, gamma_ref, beta_ref, y_ref, mu_ref, var_ref, *,
                       n_valid, inv_n, eps, mask_rows):
    """Single HBM pass: per-feature stats over the full batch + folded affine."""
    x = x_ref[...].astype(jnp.float32)
    # Shifted one-pass statistics: subtracting the tile's first (always valid)
    # row removes the bulk of the mean offset before the sum/sum-sq.
    c = x[0:1, :]
    xc = x - c
    if mask_rows:
        # Partial batch block: rows >= n_valid hold stale VMEM, mask them out
        # of the statistics (they are never written back).
        rows = lax.broadcasted_iota(jnp.int32, (x.shape[0], 1), 0)
        xc = jnp.where(rows < n_valid, xc, 0.0)
    s1 = jnp.sum(xc, axis=0, keepdims=True)
    s2 = jnp.sum(xc * xc, axis=0, keepdims=True)
    m = s1 * inv_n
    mu = m + c
    var = jnp.maximum(s2 * inv_n - m * m, 0.0)     # biased (unbiased=False)
    # rsqrt goes to the EUP slot; fold gamma/mu/beta into a single affine.
    scale = gamma_ref[...].astype(jnp.float32) * lax.rsqrt(var + eps)
    shift = beta_ref[...].astype(jnp.float32) - mu * scale
    y_ref[...] = (x * scale + shift).astype(y_ref.dtype)
    mu_ref[...] = mu
    var_ref[...] = var


def _bn_stats_kernel(x_ref, mu_ref, var_ref, c_ref, s1_ref, s2_ref, *,
                     n_total, tile_n, inv_n):
    """Two-phase pass 1: accumulate shifted sum / sum-sq over batch tiles."""
    i = pl.program_id(1)

    @pl.when(i == 0)
    def _():
        c_ref[...] = x_ref[0:1, :].astype(jnp.float32)
        s1_ref[...] = jnp.zeros_like(s1_ref)
        s2_ref[...] = jnp.zeros_like(s2_ref)

    x = x_ref[...].astype(jnp.float32)
    xc = x - c_ref[...]
    rows = lax.broadcasted_iota(jnp.int32, (x.shape[0], 1), 0)
    xc = jnp.where(rows < (n_total - i * tile_n), xc, 0.0)
    s1_ref[...] += jnp.sum(xc, axis=0, keepdims=True)
    s2_ref[...] += jnp.sum(xc * xc, axis=0, keepdims=True)

    @pl.when(i == pl.num_programs(1) - 1)
    def _():
        m = s1_ref[...] * inv_n
        mu_ref[...] = m + c_ref[...]
        var_ref[...] = jnp.maximum(s2_ref[...] * inv_n - m * m, 0.0)


def _bn_norm_kernel(x_ref, scale_ref, shift_ref, y_ref):
    """Pure elementwise folded affine: y = x * scale + shift."""
    x = x_ref[...].astype(jnp.float32)
    y_ref[...] = (x * scale_ref[...] + shift_ref[...]).astype(y_ref.dtype)


# ----------------------------------------------------------------------------
# Wrappers
# ----------------------------------------------------------------------------
def _pick_elementwise_tiles(n, d, in_item, sublane, budget,
                            tile_n=None, tile_d=None):
    d_aligned = _round_up(d, 128)
    n_pad = _round_up(n, sublane)
    if tile_d is None:
        td = min(512, d_aligned)
    else:
        td = max(128, _round_up(int(tile_d), 128))
    td = min(td, d_aligned)
    if d_aligned >= 256:
        # Keep >= 2 feature tiles so both v7x TensorCores get work.
        td = min(td, max(128, (d_aligned // 2) // 128 * 128))
    target_block = 2 * 1024 * 1024
    if tile_n is None:
        tn = (target_block // max(1, td * in_item)) // sublane * sublane
    else:
        tn = _round_up(int(tile_n), sublane)
    tn = max(sublane, min(tn, n_pad))
    # Respect the VMEM budget (x in + y out, double buffered).
    while tn > sublane and 4 * tn * td * in_item > budget:
        tn = max(sublane, ((tn // 2) // sublane) * sublane)
    return tn, td


def _normalize_call(x, scale, shift, *, tile_n, tile_d, vmem_limit):
    n, d = x.shape
    in_item = jnp.dtype(x.dtype).itemsize
    num_d = pl.cdiv(d, tile_d)
    num_n = pl.cdiv(n, tile_n)
    cost = pl.CostEstimate(flops=2 * n * d, transcendentals=0,
                           bytes_accessed=2 * n * d * in_item + 2 * d * 4)
    return pl.pallas_call(
        _bn_norm_kernel,
        grid=(num_d, num_n),
        out_shape=jax.ShapeDtypeStruct((n, d), x.dtype),
        in_specs=[
            pl.BlockSpec((tile_n, tile_d), lambda j, i: (i, j)),
            pl.BlockSpec((1, tile_d), lambda j, i: (0, j)),
            pl.BlockSpec((1, tile_d), lambda j, i: (0, j)),
        ],
        out_specs=pl.BlockSpec((tile_n, tile_d), lambda j, i: (i, j)),
        compiler_params=pltpu.CompilerParams(
            dimension_semantics=("parallel", "parallel"),
            vmem_limit_bytes=vmem_limit),
        cost_estimate=cost,
    )(x, scale, shift)


def batch_norm_forward(x, gamma, beta, *, eps=1e-5, tile_d=None, tile_n=None,
                       two_phase=None):
    """Training-mode BatchNorm forward.  Returns (y, mu, var).

    x: (N, D); gamma, beta: (D,).  mu/var are the biased batch statistics
    (matching x.var(unbiased=False) in the reference module), shape (1, D).
    """
    n, d = x.shape
    in_item = jnp.dtype(x.dtype).itemsize
    out_item = in_item

    sublane = 8 * max(1, 4 // in_item)
    n_pad = _round_up(n, sublane)          # block shape only; x is NOT padded
    d_aligned = _round_up(d, 128)

    vmem_budget, vmem_limit = _vmem_sizes()

    gamma2 = gamma.reshape(1, d)
    beta2 = beta.reshape(1, d)

    # Per-128-lane-column cost of one single-pass column strip: double-buffered
    # in/out blocks plus an f32 working copy only when a cast is needed.
    work = 0 if x.dtype == jnp.float32 else 4
    bytes_per_lane = n_pad * (2 * in_item + 2 * out_item + work) + 64

    if two_phase is None:
        # Single pass is worth it only while we can keep >= 512-lane strips.
        min_useful = min(512, d_aligned)
        two_phase = bytes_per_lane * min_useful > vmem_budget

    if not two_phase:
        # ---------------- single-pass path ----------------
        target_x_block = 4 * 1024 * 1024
        t_budget = max(128, (vmem_budget // bytes_per_lane) // 128 * 128)
        t_target = max(128, (target_x_block // max(1, n_pad * in_item)) // 128 * 128)
        if tile_d is None:
            td = min(t_budget, t_target)
        else:
            td = max(128, _round_up(int(tile_d), 128))
            td = min(td, t_budget)          # clamp user tile against VMEM budget
        td = min(td, d_aligned)
        if d_aligned >= 256:
            td = min(td, max(128, (d_aligned // 2) // 128 * 128))
        num_d = pl.cdiv(d, td)

        x_block_bytes = n_pad * td * in_item
        bufs = 3 if (x_block_bytes <= 512 * 1024 and num_d >= 2) else None

        kernel = functools.partial(
            _bn_onepass_kernel, n_valid=n, inv_n=1.0 / n, eps=eps,
            mask_rows=(n_pad != n))
        cost = pl.CostEstimate(
            flops=8 * n * d, transcendentals=d,
            bytes_accessed=n * d * (in_item + out_item) + 4 * d * 4)

        y, mu, var = pl.pallas_call(
            kernel,
            grid=(num_d,),
            out_shape=(
                jax.ShapeDtypeStruct((n, d), x.dtype),
                jax.ShapeDtypeStruct((1, d), jnp.float32),
                jax.ShapeDtypeStruct((1, d), jnp.float32),
            ),
            in_specs=[
                _make_block_spec((n_pad, td), lambda j: (0, j), bufs),
                pl.BlockSpec((1, td), lambda j: (0, j)),
                pl.BlockSpec((1, td), lambda j: (0, j)),
            ],
            out_specs=(
                pl.BlockSpec((n_pad, td), lambda j: (0, j)),
                pl.BlockSpec((1, td), lambda j: (0, j)),
                pl.BlockSpec((1, td), lambda j: (0, j)),
            ),
            compiler_params=pltpu.CompilerParams(
                dimension_semantics=("parallel",),
                vmem_limit_bytes=vmem_limit),
            cost_estimate=cost,
        )(x, gamma2, beta2)
        return y, mu, var

    # ---------------- two-phase (large-N) path ----------------
    tn, td = _pick_elementwise_tiles(n, d, in_item, sublane, vmem_budget,
                                     tile_n=tile_n, tile_d=tile_d)
    num_d = pl.cdiv(d, td)
    num_n = pl.cdiv(n, tn)

    stats_kernel = functools.partial(
        _bn_stats_kernel, n_total=n, tile_n=tn, inv_n=1.0 / n)
    mu, var = pl.pallas_call(
        stats_kernel,
        grid=(num_d, num_n),
        out_shape=(
            jax.ShapeDtypeStruct((1, d), jnp.float32),
            jax.ShapeDtypeStruct((1, d), jnp.float32),
        ),
        in_specs=[pl.BlockSpec((tn, td), lambda j, i: (i, j))],
        out_specs=(
            pl.BlockSpec((1, td), lambda j, i: (0, j)),
            pl.BlockSpec((1, td), lambda j, i: (0, j)),
        ),
        scratch_shapes=[
            pltpu.VMEM((1, td), jnp.float32),   # shift row c
            pltpu.VMEM((1, td), jnp.float32),   # sum(x - c)
            pltpu.VMEM((1, td), jnp.float32),   # sum((x - c)^2)
        ],
        compiler_params=pltpu.CompilerParams(
            dimension_semantics=("parallel", "arbitrary"),
            vmem_limit_bytes=vmem_limit),
        cost_estimate=pl.CostEstimate(
            flops=5 * n * d, transcendentals=0,
            bytes_accessed=n * d * in_item + 2 * d * 4),
    )(x)

    # Tiny (1, D) finalize in plain JAX: fold gamma/mu/beta into one affine.
    scale = gamma2.astype(jnp.float32) * lax.rsqrt(var + eps)
    shift = beta2.astype(jnp.float32) - mu * scale
    y = _normalize_call(x, scale, shift, tile_n=tn, tile_d=td,
                        vmem_limit=vmem_limit)
    return y, mu, var


def batch_norm_inference(x, gamma, beta, cum_mu, cum_var, *, eps=1e-5,
                         tile_d=None, tile_n=None):
    """Eval-mode BatchNorm forward using running statistics."""
    n, d = x.shape
    in_item = jnp.dtype(x.dtype).itemsize
    sublane = 8 * max(1, 4 // in_item)
    vmem_budget, vmem_limit = _vmem_sizes()
    tn, td = _pick_elementwise_tiles(n, d, in_item, sublane, vmem_budget,
                                     tile_n=tile_n, tile_d=tile_d)
    scale = (gamma.astype(jnp.float32).reshape(1, d)
             * lax.rsqrt(cum_var.astype(jnp.float32).reshape(1, d) + eps))
    shift = beta.astype(jnp.float32).reshape(1, d) \
        - cum_mu.astype(jnp.float32).reshape(1, d) * scale
    return _normalize_call(x, scale, shift, tile_n=tn, tile_d=td,
                           vmem_limit=vmem_limit)


def update_running_stats(cum_mu, cum_var, mu, var, *, momentum=0.1, n_batches=0):
    """Plain-JAX glue mirroring BatchNorm._update_cum_mu / _update_cum_var.

    The reference module updates running stats with the *biased* batch
    variance (it reuses the unbiased=False var), which is what we pass here.
    """
    mu = mu.reshape(cum_mu.shape)
    var = var.reshape(cum_var.shape)
    if momentum:
        new_mu = momentum * mu + (1.0 - momentum) * cum_mu
        new_var = momentum * var + (1.0 - momentum) * cum_var
    else:
        new_mu = cum_mu + (mu - cum_mu) / (n_batches + 1)
        new_var = cum_var + (var - cum_var) / (n_batches + 1)
    return new_mu, new_var


def _reference(x, gamma, beta, eps):
    mu = jnp.mean(x, axis=0, keepdims=True)
    var = jnp.mean((x - mu) ** 2, axis=0, keepdims=True)
    y = gamma * (x - mu) / jnp.sqrt(var + eps) + beta
    return y, mu, var


if __name__ == "__main__":
    key = jax.random.PRNGKey(0)
    k1, k2, k3 = jax.random.split(key, 3)

    # Case 1: small (batch, hidden) consistent with BatchNorm(dim=D).
    N, D = 8, 32
    x = jax.random.normal(k1, (N, D), dtype=jnp.float32) * 2.0 + 0.5
    gamma = jnp.ones((D,), dtype=jnp.float32)
    beta = jnp.zeros((D,), dtype=jnp.float32)
    cum_mu = jnp.zeros((D,), dtype=jnp.float32)
    cum_var = jnp.ones((D,), dtype=jnp.float32)

    y, mu, var = batch_norm_forward(x, gamma, beta, eps=1e-5)
    cum_mu, cum_var = update_running_stats(cum_mu, cum_var, mu, var, momentum=0.1)
    jax.block_until_ready((y, mu, var, cum_mu, cum_var))
    y_ref, mu_ref, var_ref = _reference(x, gamma, beta, 1e-5)
    assert jnp.allclose(y, y_ref, atol=1e-4, rtol=1e-4), "case1: y mismatch"
    assert jnp.allclose(mu, mu_ref, atol=1e-5, rtol=1e-5), "case1: mu mismatch"
    assert jnp.allclose(var, var_ref, atol=1e-4, rtol=1e-4), "case1: var mismatch"

    # Case 2: unaligned N and D with a forced tile — exercises the in-kernel
    # row mask and partial lane blocks (no wrapper pad/slice of x or y).
    N2, D2 = 10, 600
    x2 = jax.random.normal(k2, (N2, D2), dtype=jnp.float32) * 1.5 - 0.25
    gamma2 = 0.5 + jnp.arange(D2, dtype=jnp.float32) / D2
    beta2 = jnp.linspace(-1.0, 1.0, D2, dtype=jnp.float32)

    y2, mu2, var2 = batch_norm_forward(x2, gamma2, beta2, eps=1e-5, tile_d=256)
    jax.block_until_ready((y2, mu2, var2))
    y2_ref, mu2_ref, var2_ref = _reference(x2, gamma2, beta2, 1e-5)
    assert jnp.allclose(y2, y2_ref, atol=1e-4, rtol=1e-4), "case2: y mismatch"
    assert jnp.allclose(mu2, mu2_ref, atol=1e-5, rtol=1e-5), "case2: mu mismatch"
    assert jnp.allclose(var2, var2_ref, atol=1e-4, rtol=1e-4), "case2: var mismatch"

    # Case 3: force the two-phase (large-N fallback) path at a small shape to
    # exercise the accumulator grid, pl.when init/finalize and batch masking.
    N3, D3 = 40, 300
    x3 = jax.random.normal(k3, (N3, D3), dtype=jnp.float32) * 3.0 + 2.0
    gamma3 = jnp.full((D3,), 1.25, dtype=jnp.float32)
    beta3 = jnp.full((D3,), -0.5, dtype=jnp.float32)

    y3, mu3, var3 = batch_norm_forward(x3, gamma3, beta3, eps=1e-5,
                                       two_phase=True, tile_d=128, tile_n=16)
    jax.block_until_ready((y3, mu3, var3))
    y3_ref, mu3_ref, var3_ref = _reference(x3, gamma3, beta3, 1e-5)
    assert jnp.allclose(y3, y3_ref, atol=1e-4, rtol=1e-4), "case3: y mismatch"
    assert jnp.allclose(mu3, mu3_ref, atol=1e-4, rtol=1e-5), "case3: mu mismatch"
    assert jnp.allclose(var3, var3_ref, atol=1e-3, rtol=1e-4), "case3: var mismatch"

    # Case 4: eval-mode branch of the module (running statistics).
    cm = jnp.linspace(-0.3, 0.4, D2, dtype=jnp.float32)
    cv = jnp.linspace(0.5, 2.0, D2, dtype=jnp.float32)
    y4 = batch_norm_inference(x2, gamma2, beta2, cm, cv, eps=1e-5)
    jax.block_until_ready(y4)
    y4_ref = gamma2 * (x2 - cm) / jnp.sqrt(cv + 1e-5) + beta2
    assert jnp.allclose(y4, y4_ref, atol=1e-4, rtol=1e-4), "case4: y mismatch"

    print("KERNEL_OK")
</pallas_src>

<mosaic_0001>
module attributes {stable_mosaic.version = 11 : i64} {
  func.func @_bn_onepass_kernel(%arg0: i32, %arg1: memref<8x128xf32, #tpu.memory_space<vmem>>, %arg2: memref<1x128xf32, #tpu.memory_space<vmem>>, %arg3: memref<1x128xf32, #tpu.memory_space<vmem>>, %arg4: memref<8x128xf32, #tpu.memory_space<vmem>>, %arg5: memref<1x128xf32, #tpu.memory_space<vmem>>, %arg6: memref<1x128xf32, #tpu.memory_space<vmem>>) attributes {dimension_semantics = [#tpu.dimension_semantics<parallel>], iteration_bounds = array<i64: 1>, scalar_prefetch = 0 : i64, scratch_operands = 0 : i64, tpu.core_type = #tpu.core_type<tc>, window_params = [{transform_indices = @transform_0, window_bounds = array<i64: 8, 128>}, {transform_indices = @transform_1, window_bounds = array<i64: 1, 128>}, {transform_indices = @transform_2, window_bounds = array<i64: 1, 128>}, {transform_indices = @transform_3, window_bounds = array<i64: 8, 128>}, {transform_indices = @transform_4, window_bounds = array<i64: 1, 128>}, {transform_indices = @transform_5, window_bounds = array<i64: 1, 128>}]} {
    %c0 = arith.constant 0 : index
    %c0_0 = arith.constant 0 : index
    %0 = vector.load %arg1[%c0, %c0_0] : memref<8x128xf32, #tpu.memory_space<vmem>>, vector<8x128xf32>
    %1 = vector.extract_strided_slice %0 {offsets = [0, 0], sizes = [1, 128], strides = [1, 1]} : vector<8x128xf32> to vector<1x128xf32>
    %2 = vector.broadcast %1 : vector<1x128xf32> to vector<8x128xf32>
    %3 = arith.subf %0, %2 : vector<8x128xf32>
    %cst = arith.constant dense<0.000000e+00> : vector<128xf32>
    %4 = vector.multi_reduction <add>, %3, %cst [0] : vector<8x128xf32> to vector<128xf32>
    %5 = vector.shape_cast %4 : vector<128xf32> to vector<1x128xf32>
    %6 = arith.mulf %3, %3 : vector<8x128xf32>
    %cst_1 = arith.constant dense<0.000000e+00> : vector<128xf32>
    %7 = vector.multi_reduction <add>, %6, %cst_1 [0] : vector<8x128xf32> to vector<128xf32>
    %8 = vector.shape_cast %7 : vector<128xf32> to vector<1x128xf32>
    %cst_2 = arith.constant 1.250000e-01 : f32
    %9 = vector.broadcast %cst_2 : f32 to vector<1x128xf32>
    %10 = arith.mulf %5, %9 : vector<1x128xf32>
    %11 = arith.addf %10, %1 : vector<1x128xf32>
    %cst_3 = arith.constant 1.250000e-01 : f32
    %12 = vector.broadcast %cst_3 : f32 to vector<1x128xf32>
    %13 = arith.mulf %8, %12 : vector<1x128xf32>
    %14 = arith.mulf %10, %10 : vector<1x128xf32>
    %15 = arith.subf %13, %14 : vector<1x128xf32>
    %cst_4 = arith.constant 0.000000e+00 : f32
    %16 = vector.broadcast %cst_4 : f32 to vector<1x128xf32>
    %17 = arith.maximumf %15, %16 : vector<1x128xf32>
    %c0_5 = arith.constant 0 : index
    %c0_6 = arith.constant 0 : index
    %18 = vector.load %arg2[%c0_5, %c0_6] : memref<1x128xf32, #tpu.memory_space<vmem>>, vector<1x128xf32>
    %cst_7 = arith.constant 9.99999974E-6 : f32
    %19 = vector.broadcast %cst_7 : f32 to vector<1x128xf32>
    %20 = arith.addf %17, %19 : vector<1x128xf32>
    %21 = math.rsqrt %20 : vector<1x128xf32>
    %22 = arith.mulf %18, %21 : vector<1x128xf32>
    %c0_8 = arith.constant 0 : index
    %c0_9 = arith.constant 0 : index
    %23 = vector.load %arg3[%c0_8, %c0_9] : memref<1x128xf32, #tpu.memory_space<vmem>>, vector<1x128xf32>
    %24 = arith.mulf %11, %22 : vector<1x128xf32>
    %25 = arith.subf %23, %24 : vector<1x128xf32>
    %26 = vector.broadcast %22 : vector<1x128xf32> to vector<8x128xf32>
    %27 = arith.mulf %0, %26 : vector<8x128xf32>
    %28 = vector.broadcast %25 : vector<1x128xf32> to vector<8x128xf32>
    %29 = arith.addf %27, %28 : vector<8x128xf32>
    %c0_10 = arith.constant 0 : index
    %c0_11 = arith.constant 0 : index
    %30 = vector.load %arg4[%c0_10, %c0_11] : memref<8x128xf32, #tpu.memory_space<vmem>>, vector<8x128xf32>
    tpu.vector_store %arg4[%c0_10, %c0_11], %29 {strides = array<i32>} : memref<8x128xf32, #tpu.memory_space<vmem>>, vector<8x128xf32>,
    %c0_12 = arith.constant 0 : index
    %c0_13 = arith.constant 0 : index
    %31 = vector.load %arg5[%c0_12, %c0_13] : memref<1x128xf32, #tpu.memory_space<vmem>>, vector<1x128xf32>
    tpu.vector_store %arg5[%c0_12, %c0_13], %11 {strides = array<i32>} : memref<1x128xf32, #tpu.memory_space<vmem>>, vector<1x128xf32>,
    %c0_14 = arith.constant 0 : index
    %c0_15 = arith.constant 0 : index
    %32 = vector.load %arg6[%c0_14, %c0_15] : memref<1x128xf32, #tpu.memory_space<vmem>>, vector<1x128xf32>
    tpu.vector_store %arg6[%c0_14, %c0_15], %17 {strides = array<i32>} : memref<1x128xf32, #tpu.memory_space<vmem>>, vector<1x128xf32>,
    return
  }
  func.func @transform_0(%arg0: i32) -> (i32, i32) {
    %c0_i32 = arith.constant 0 : i32
    %c0_i32_0 = arith.constant 0 : i32
    return %c0_i32, %arg0 : i32, i32
  }
  func.func @transform_1(%arg0: i32) -> (i32, i32) {
    %c0_i32 = arith.constant 0 : i32
    %c0_i32_0 = arith.constant 0 : i32
    return %c0_i32, %arg0 : i32, i32
  }
  func.func @transform_2(%arg0: i32) -> (i32, i32) {
    %c0_i32 = arith.constant 0 : i32
    %c0_i32_0 = arith.constant 0 : i32
    return %c0_i32, %arg0 : i32, i32
  }
  func.func @transform_3(%arg0: i32) -> (i32, i32) {
    %c0_i32 = arith.constant 0 : i32
    %c0_i32_0 = arith.constant 0 : i32
    return %c0_i32, %arg0 : i32, i32
  }
  func.func @transform_4(%arg0: i32) -> (i32, i32) {
    %c0_i32 = arith.constant 0 : i32
    %c0_i32_0 = arith.constant 0 : i32
    return %c0_i32, %arg0 : i32, i32
  }
  func.func @transform_5(%arg0: i32) -> (i32, i32) {
    %c0_i32 = arith.constant 0 : i32
    %c0_i32_0 = arith.constant 0 : i32
    return %c0_i32, %arg0 : i32, i32
  }
}

</mosaic_0001>

<llo_original>
// kernel: tpu_custom_call.1
$region0: #{tpu_custom_call.1}
  #allocation0 [shape = 'u32[]', space=smem, size = 0x4, offset = 0x4, fixed_abs, tag = 'smem constant byte address 0x4 - core index']
  #allocation1 [shape = 'u32[72,128]{1,0:T(1,128)}', space=vmem, size = 0x9000, scoped, tag = 'internal scratch']
  %s0 = inlined_call_operand.hbm [shape: f32[8,32], index: 0, kind: input, shape index: {}]
  %s1 = inlined_call_operand.hbm [shape: f32[1,32], index: 1, kind: input, shape index: {}]
  %s2 = inlined_call_operand.vmem [shape: f32[1,32], index: 2, kind: input, shape index: {}]
  %s3 = inlined_call_operand.hbm [shape: f32[8,32], index: 3, kind: output, shape index: {0}]
  %s4 = inlined_call_operand.hbm [shape: f32[1,32], index: 4, kind: output, shape index: {1}]
  %s5 = inlined_call_operand.hbm [shape: f32[1,32], index: 5, kind: output, shape index: {2}]
  %6 = xla_tuple %s3, %s4, %s5
  %s7 = sld [smem:[#allocation0]]
  $region46: #{tpu_custom_call.1} parent=0
    _
  %s9 = ssub.s32 1, %s7
  %s10 = scalar_select 0, %s9, %s7
  $region1: #{tpu_custom_call.1} parent=0
    #allocation2 [shape = 'u8[4096]{0}', space=vmem, size = 0x1000, scoped, tag = 'input window, operand 0, single buffered']
    #allocation3 [shape = 's32[1]{0}', space=sflag, size = 0x4, scoped, tag = 'scoped memory for tpu_custom_call.1']
    #allocation4 [shape = 's32[1]{0}', space=sflag, size = 0x4, scoped, tag = 'scoped memory for tpu_custom_call.1']
    #allocation5 [shape = 'u8[512]{0}', space=vmem, size = 0x400, scoped, tag = 'input window, operand 1, single buffered']
    #allocation6 [shape = 's32[1]{0}', space=sflag, size = 0x4, scoped, tag = 'scoped memory for tpu_custom_call.1']
    #allocation7 [shape = 'u8[4096]{0}', space=vmem, size = 0x1000, scoped, tag = 'output window, operand 0, single buffered']
    #allocation8 [shape = 'u8[512]{0}', space=vmem, size = 0x400, scoped, tag = 'output window, operand 1, single buffered']
    #allocation9 [shape = 's32[1]{0}', space=sflag, size = 0x4, scoped, tag = 'scoped memory for tpu_custom_call.1']
    #allocation10 [shape = 'u8[512]{0}', space=vmem, size = 0x400, scoped, tag = 'output window, operand 2, single buffered']
    %11 = vsyncpa [#allocation3], 0
    %12 = vsyncpa [#allocation6], 0
    %13 = vsyncpa [#allocation4], 0
    %14 = vsyncpa [#allocation9], 0
    // Predicated region
    $region2: #{tpu_custom_call.1} parent=1 // pred_check
      _
    $region3: #{tpu_custom_call.1} parent=1 // pred_check_branch
      %16 = sbr.rel (0) target = $region5
    $region4: #{tpu_custom_call.1} parent=1 // pred_region
      %18 = vsyncadd [#allocation3], 0
      %s20 = sshll.u32 %s0, 4
      %s21 = int_to_ptr.hbm [resolvable:$true] %s20
      %s22 = sshll.u32 [#allocation2], 4
      %s23 = int_to_ptr.vmem [resolvable:$true] %s22
      %25 = dma.hbm_to_vmem [thread:$0]  %s21, 128, %s23, [#allocation3]
    $region5: #{tpu_custom_call.1} parent=1 // pred_fallthru
      _
    // Predicated region
    $region6: #{tpu_custom_call.1} parent=1 // pred_check
      _
    $region7: #{tpu_custom_call.1} parent=1 // pred_check_branch
      %27 = sbr.rel (0) target = $region9
    $region8: #{tpu_custom_call.1} parent=1 // pred_region
      %29 = vsyncadd [#allocation6], 0
      %s31 = sshll.u32 %s1, 4
      %s32 = int_to_ptr.hbm [resolvable:$true] %s31
      %s33 = sshll.u32 [#allocation5], 4
      %s34 = int_to_ptr.vmem [resolvable:$true] %s33
      %36 = dma.hbm_to_vmem [thread:$0]  %s32, 16, %s34, [#allocation6]
    $region9: #{tpu_custom_call.1} parent=1 // pred_fallthru
      _
    // Predicated region
    $region10: #{tpu_custom_call.1} parent=1 // pred_check
      _
    $region11: #{tpu_custom_call.1} parent=1 // pred_check_branch
      %38 = sbr.rel (0) target = $region13
    $region12: #{tpu_custom_call.1} parent=1 // pred_region
      _
    $region13: #{tpu_custom_call.1} parent=1 // pred_fallthru
      _
    // Predicated region
    $region14: #{tpu_custom_call.1} parent=1 // pred_check
      _
    $region15: #{tpu_custom_call.1} parent=1 // pred_check_branch
      %40 = sbr.rel (0) target = $region17
    $region16: #{tpu_custom_call.1} parent=1 // pred_region
      %42 = dma.done [#allocation3], 128
    $region17: #{tpu_custom_call.1} parent=1 // pred_fallthru
      _
    // Predicated region
    $region18: #{tpu_custom_call.1} parent=1 // pred_check
      _
    $region19: #{tpu_custom_call.1} parent=1 // pred_check_branch
      %44 = sbr.rel (0) target = $region21
    $region20: #{tpu_custom_call.1} parent=1 // pred_region
      %46 = dma.done [#allocation6], 16
    $region21: #{tpu_custom_call.1} parent=1 // pred_fallthru
      _
    %v47 = vld [vmem:[#allocation2] sm:$0xff]
    %v48 = vperm.slane %v47, 0
    %v49 = vsub.f32 %v47, %v48
    %v50 = vrot.slane %v49, 4
    %v51 = vadd.f32 %v49, %v50
    %v52 = vrot.slane %v51, 2
    %v53 = vadd.f32 %v51, %v52
    %v54 = vrot.slane %v53, 1
    %v55 = vadd.f32 %v53, %v54
    %v56 = vmul.f32 %v49, %v49
    %v57 = vrot.slane %v56, 4
    %v58 = vadd.f32 %v56, %v57
    %v59 = vrot.slane %v58, 2
    %v60 = vadd.f32 %v58, %v59
    %v61 = vrot.slane %v60, 1
    %v62 = vadd.f32 %v60, %v61
    %v63 = vmul.f32 %v55, 0.125
    %v64 = vadd.f32 %v63, %v47
    %v65 = vmul.f32 %v62, 0.125
    %v66 = vmul.f32 %v63, %v63
    %v67 = vsub.f32 %v65, %v66
    %v68 = vmax.f32 %v67, 0.0
    %v69 = vld [vmem:[#allocation5] sm:$0x1]
    %v70 = vadd.f32 %v68, 1e-05
    %v71 = vrsqrt.pop %v70
    %v72 = vmul.f32 %v71, %v70
    %v73 = vmul.f32 %v72, %v71
    %v74 = vmul.f32 0.5, %v73
    %v75 = vsub.f32 1.5, %v74
    %v76 = vmul.f32 %v71, %v75
    %vm77 = vweird.f32 %v70
    %vm78 = vweird.f32 %v71
    %vm79 = vmor %vm77, %vm78
    %v80 = vsel %vm79, %v71, %v76
    %v81 = vmul.f32 %v69, %v80
    %v82 = vld [vmem:[%s2] sm:$0x1]
    %v83 = vmul.f32 %v64, %v81
    %v84 = vsub.f32 %v82, %v83
    %v86 = vperm.slane %v81, 0
    %v88 = vmul.f32 %v47, %v86
    %v90 = vperm.slane %v84, 0
    %v92 = vadd.f32 %v88, %v90
    %93 = vst [vmem:[#allocation7] sm:$0xff] %v92
    %94 = vst [vmem:[#allocation8] sm:$0x1] %v64
    %95 = vst [vmem:[#allocation10] sm:$0x1] %v68
    // Predicated region
    $region22: #{tpu_custom_call.1} parent=1 // pred_check
      _
    $region23: #{tpu_custom_call.1} parent=1 // pred_check_branch
      %97 = sbr.rel (0) target = $region25
    $region24: #{tpu_custom_call.1} parent=1 // pred_region
      %99 = vsyncadd [#allocation4], 0
      %s101 = sshll.u32 [#allocation7], 4
      %s102 = int_to_ptr.vmem [resolvable:$true] %s101
      %s103 = sshll.u32 %s3, 4
      %s104 = int_to_ptr.hbm [resolvable:$true] %s103
      %106 = dma.vmem_to_hbm [thread:$0]  %s102, 128, %s104, [#allocation4]
    $region25: #{tpu_custom_call.1} parent=1 // pred_fallthru
      _
    // Predicated region
    $region26: #{tpu_custom_call.1} parent=1 // pred_check
      _
    $region27: #{tpu_custom_call.1} parent=1 // pred_check_branch
      %108 = sbr.rel (0) target = $region29
    $region28: #{tpu_custom_call.1} parent=1 // pred_region
      %110 = vsyncadd [#allocation9], 0
      %s112 = sshll.u32 [#allocation8], 4
      %s113 = int_to_ptr.vmem [resolvable:$true] %s112
      %s114 = sshll.u32 %s4, 4
      %s115 = int_to_ptr.hbm [resolvable:$true] %s114
      %117 = dma.vmem_to_hbm [thread:$0]  %s113, 16, %s115, [#allocation9]
    $region29: #{tpu_custom_call.1} parent=1 // pred_fallthru
      _
    // Predicated region
    $region30: #{tpu_custom_call.1} parent=1 // pred_check
      _
    $region31: #{tpu_custom_call.1} parent=1 // pred_check_branch
      %119 = sbr.rel (0) target = $region33
    $region32: #{tpu_custom_call.1} parent=1 // pred_region
      %121 = vsyncadd [#allocation9], 0
      %s123 = sshll.u32 [#allocation10], 4
      %s124 = int_to_ptr.vmem [resolvable:$true] %s123
      %s125 = sshll.u32 %s5, 4
      %s126 = int_to_ptr.hbm [resolvable:$true] %s125
      %128 = dma.vmem_to_hbm [thread:$0]  %s124, 16, %s126, [#allocation9]
    $region33: #{tpu_custom_call.1} parent=1 // pred_fallthru
      _
    // Predicated region
    $region34: #{tpu_custom_call.1} parent=1 // pred_check
      _
    $region35: #{tpu_custom_call.1} parent=1 // pred_check_branch
      %130 = sbr.rel (0) target = $region37
    $region36: #{tpu_custom_call.1} parent=1 // pred_region
      %132 = dma.done [#allocation4], 128
    $region37: #{tpu_custom_call.1} parent=1 // pred_fallthru
      _
    // Predicated region
    $region38: #{tpu_custom_call.1} parent=1 // pred_check
      _
    $region39: #{tpu_custom_call.1} parent=1 // pred_check_branch
      %134 = sbr.rel (0) target = $region41
    $region40: #{tpu_custom_call.1} parent=1 // pred_region
      %136 = dma.done [#allocation9], 16
    $region41: #{tpu_custom_call.1} parent=1 // pred_fallthru
      _
    // Predicated region
    $region42: #{tpu_custom_call.1} parent=1 // pred_check
      _
    $region43: #{tpu_custom_call.1} parent=1 // pred_check_branch
      %138 = sbr.rel (0) target = $region45
    $region44: #{tpu_custom_call.1} parent=1 // pred_region
      %140 = dma.done [#allocation9], 16
    $region45: #{tpu_custom_call.1} parent=1 // pred_fallthru
      _
    %141 = vsyncpa [#allocation3], 1
    %142 = vsyncpa [#allocation6], 1
    %143 = vsyncpa [#allocation4], 1
    %144 = vsyncpa [#allocation9], 1

</llo_original>
